<compile_context>
chip_gen: v7x
topology: tpu7x:2x2x1
jax: 0.10.0
libtpu: 0.0.40
codegen_flags: <defaults>
</compile_context>

<pallas_src>
import functools

import jax
import jax.numpy as jnp
from jax.experimental import pallas as pl
from jax.experimental.pallas import tpu as pltpu

MARGIN = 1.0
_SUBLANE = 8
_LANE = 128
_TILE = _SUBLANE * _LANE          # 1024 elements
_MAX_BLOCK_ROWS = 4096            # 4096*128*4B = 2 MiB per f32 input block


def _num_tensorcores() -> int:
    """Best-effort TensorCore count per device (v7x has 2; v5e/v6e have 1)."""
    try:
        dev = jax.devices()[0]
        nc = getattr(dev, "num_cores", None)
        if nc:
            return int(nc)
        kind = str(getattr(dev, "device_kind", "")).lower()
        if "v7" in kind:
            return 2
    except Exception:
        pass
    return 1


def _hinge_kernel(x_ref, t_ref, o_ref, *, block_rows, rows_valid):
    p = pl.program_id(0)              # outer (per-TensorCore partition) axis
    i = pl.program_id(1)              # inner (sequential reduction) axis

    # The output block (p, 0, 0) is resident across the inner axis and acts as
    # the (8, 128) accumulator; zero it at the start of each partition.
    @pl.when(i == 0)
    def _():
        o_ref[...] = jnp.zeros_like(o_ref)

    # Elementwise hot path (VPU); cast from native dtype in-kernel.
    x = x_ref[...].astype(jnp.float32)
    t = t_ref[...].astype(jnp.float32)
    hinge = jnp.maximum(MARGIN - x * t, 0.0)          # (block_rows, 128)

    n_sub = block_rows // _SUBLANE

    def _accumulate(h):
        # Fold the block into an (8, 128) partial: pure sublane-group VPU adds.
        o_ref[0] += h.reshape(n_sub, _SUBLANE, _LANE).sum(axis=0)

    # Unclamped block id -> first row this step *should* cover.
    blk = p * pl.num_programs(1) + i
    row0 = blk * block_rows
    interior = row0 + block_rows <= rows_valid

    # Fast path: interior blocks accumulate with no masking work at all.
    @pl.when(interior)
    def _():
        _accumulate(hinge)

    # Slow path: grid overhang on the last real block and clamped duplicate
    # blocks on the trailing partition; zero every row past the valid data.
    @pl.when(jnp.logical_not(interior))
    def _():
        row_ids = row0 + jax.lax.broadcasted_iota(jnp.int32, hinge.shape, 0)
        _accumulate(jnp.where(row_ids < rows_valid, hinge, 0.0))


def _hinge_sum_aligned(xm, tm, n_parts):
    """Sum of max(0, 1 - x*t) over (rows, 128) arrays with rows % 8 == 0."""
    rows = xm.shape[0]
    block_rows = min(_MAX_BLOCK_ROWS, rows)           # multiple of 8
    n_blocks = -(-rows // block_rows)
    n_parts = n_parts if n_blocks >= 2 else 1
    inner = -(-n_blocks // n_parts)

    def in_map(p, i):
        # Clamp so the DMA never walks past the array. With n_parts == 2 and
        # odd n_blocks the clamped index equals the previous inner step's block
        # of that partition, so the pipeline elides the redundant DMA; the
        # block's contribution is masked to zero inside the kernel.
        return (jnp.minimum(p * inner + i, n_blocks - 1), 0)

    kernel = functools.partial(
        _hinge_kernel, block_rows=block_rows, rows_valid=rows)

    itemsize = xm.dtype.itemsize + tm.dtype.itemsize
    cost = pl.CostEstimate(flops=3 * rows * _LANE, transcendentals=0,
                           bytes_accessed=rows * _LANE * itemsize)

    partials = pl.pallas_call(
        kernel,
        out_shape=jax.ShapeDtypeStruct((n_parts, _SUBLANE, _LANE), jnp.float32),
        grid_spec=pltpu.PrefetchScalarGridSpec(
            num_scalar_prefetch=0,
            grid=(n_parts, inner),
            in_specs=[
                pl.BlockSpec((block_rows, _LANE), in_map),
                pl.BlockSpec((block_rows, _LANE), in_map),
            ],
            out_specs=pl.BlockSpec((1, _SUBLANE, _LANE), lambda p, i: (p, 0, 0)),
        ),
        compiler_params=pltpu.CompilerParams(
            # TODO(synk): verify on a v7x trace that this axis really shards
            # across both TensorCores; if not, switch it to pltpu.CORE_PARALLEL.
            dimension_semantics=("parallel", "arbitrary"),
        ),
        cost_estimate=cost,
    )(xm, tm)

    # Tiny cross-lane reduce over (n_parts, 8, 128) happens here, not in-kernel.
    return jnp.sum(partials)


def hinge_loss(x, target):
    """Pallas equivalent of HingeLoss.forward(input, target)."""
    assert x.shape == target.shape
    n_true = x.size
    n_parts = _num_tensorcores()

    # Flatten (free reshape for contiguous arrays); keep native dtype for DMA.
    xf = jnp.ravel(x)
    tf = jnp.ravel(target)

    n_main = (n_true // _TILE) * _TILE
    if n_main == 0:
        # Tiny input: pad a single tile (x=2, t=1 contributes exactly 0).
        pad = _TILE - n_true
        xm = jnp.pad(xf, (0, pad), constant_values=2)
        tm = jnp.pad(tf, (0, pad), constant_values=1)
        tail_sum = jnp.float32(0.0)
        n_main = _TILE
    elif n_main == n_true:
        # Common case: zero-copy reshape of the flattened inputs.
        xm, tm = xf, tf
        tail_sum = jnp.float32(0.0)
    else:
        # Ragged tail (< 1024 elements) folded with a tiny jnp computation.
        # TODO(synk): the prefix slice may still materialize a copy in XLA; a
        # fully copy-free ragged path would need a manual-DMA (pl.ANY) tail.
        xm, tm = xf[:n_main], tf[:n_main]
        xt = xf[n_main:].astype(jnp.float32)
        tt = tf[n_main:].astype(jnp.float32)
        tail_sum = jnp.sum(jnp.maximum(MARGIN - xt * tt, 0.0))

    rows = n_main // _LANE
    xm = xm.reshape(rows, _LANE)
    tm = tm.reshape(rows, _LANE)

    total = _hinge_sum_aligned(xm, tm, n_parts) + tail_sum
    # Multiply by precomputed 1/N (no divide).
    return total * jnp.float32(1.0 / n_true)


if __name__ == "__main__":
    key = jax.random.PRNGKey(0)
    kx, kt = jax.random.split(key)

    # Small NCHW-like shapes consistent with a quantization hinge loss.
    shape = (2, 4, 16, 16)
    x = jax.random.normal(kx, shape, dtype=jnp.float32)
    # Targets in {-1, +1}, as typical for hinge loss.
    target = jnp.sign(jax.random.normal(kt, shape, dtype=jnp.float32))
    target = jnp.where(target == 0, 1.0, target)

    loss = hinge_loss(x, target)
    jax.block_until_ready(loss)

    # Reference check in plain JAX (same semantics as the PyTorch module).
    ref = jnp.mean(jnp.maximum(MARGIN - x * target, 0.0))
    assert jnp.allclose(loss, ref, rtol=1e-6, atol=1e-6), (loss, ref)

    print("KERNEL_OK")
</pallas_src>

<mosaic_0001>
module attributes {stable_mosaic.version = 11 : i64} {
  func.func @_hinge_kernel(%arg0: i32, %arg1: i32, %arg2: memref<16x128xf32, #tpu.memory_space<vmem>>, %arg3: memref<16x128xf32, #tpu.memory_space<vmem>>, %arg4: memref<1x8x128xf32, #tpu.memory_space<vmem>>) attributes {dimension_semantics = [#tpu.dimension_semantics<parallel>, #tpu.dimension_semantics<arbitrary>], iteration_bounds = array<i64: 1, 1>, scalar_prefetch = 0 : i64, scratch_operands = 0 : i64, tpu.core_type = #tpu.core_type<tc>, window_params = [{transform_indices = @transform_0, window_bounds = array<i64: 16, 128>}, {transform_indices = @transform_1, window_bounds = array<i64: 16, 128>}, {transform_indices = @transform_2, window_bounds = array<i64: 1, 8, 128>}]} {
    %c0_i32 = arith.constant 0 : i32
    %0 = arith.cmpi eq, %arg1, %c0_i32 : i32
    %1 = arith.extui %0 : i1 to i32
    %c0_i32_0 = arith.constant 0 : i32
    %2 = arith.cmpi ne, %1, %c0_i32_0 : i32
    scf.if %2 {
      %cst_9 = arith.constant 0.000000e+00 : f32
      %20 = vector.broadcast %cst_9 : f32 to vector<1x8x128xf32>
      %c0_10 = arith.constant 0 : index
      %c0_11 = arith.constant 0 : index
      %c0_12 = arith.constant 0 : index
      %21 = vector.load %arg4[%c0_10, %c0_11, %c0_12] : memref<1x8x128xf32, #tpu.memory_space<vmem>>, vector<1x8x128xf32>
      tpu.vector_store %arg4[%c0_10, %c0_11, %c0_12], %20 {strides = array<i32>} : memref<1x8x128xf32, #tpu.memory_space<vmem>>, vector<1x8x128xf32>,
    } else {
    }
    %c0 = arith.constant 0 : index
    %c0_1 = arith.constant 0 : index
    %3 = vector.load %arg2[%c0, %c0_1] : memref<16x128xf32, #tpu.memory_space<vmem>>, vector<16x128xf32>
    %c0_2 = arith.constant 0 : index
    %c0_3 = arith.constant 0 : index
    %4 = vector.load %arg3[%c0_2, %c0_3] : memref<16x128xf32, #tpu.memory_space<vmem>>, vector<16x128xf32>
    %5 = arith.mulf %3, %4 : vector<16x128xf32>
    %cst = arith.constant 1.000000e+00 : f32
    %6 = vector.broadcast %cst : f32 to vector<16x128xf32>
    %7 = arith.subf %6, %5 : vector<16x128xf32>
    %cst_4 = arith.constant 0.000000e+00 : f32
    %8 = vector.broadcast %cst_4 : f32 to vector<16x128xf32>
    %9 = arith.maximumf %7, %8 : vector<16x128xf32>
    %c1_i32 = arith.constant 1 : i32
    %10 = arith.muli %arg0, %c1_i32 : i32
    %11 = arith.addi %10, %arg1 : i32
    %c16_i32 = arith.constant 16 : i32
    %12 = arith.muli %11, %c16_i32 : i32
    %c16_i32_5 = arith.constant 16 : i32
    %13 = arith.addi %12, %c16_i32_5 : i32
    %c16_i32_6 = arith.constant 16 : i32
    %14 = arith.cmpi sle, %13, %c16_i32_6 : i32
    %15 = arith.extui %14 : i1 to i32
    %c0_i32_7 = arith.constant 0 : i32
    %16 = arith.cmpi ne, %15, %c0_i32_7 : i32
    scf.if %16 {
      %c0_9 = arith.constant 0 : index
      %c0_10 = arith.constant 0 : index
      %c0_11 = arith.constant 0 : index
      %20 = vector.load %arg4[%c0_9, %c0_10, %c0_11] : memref<1x8x128xf32, #tpu.memory_space<vmem>>, vector<1x8x128xf32>
      %21 = vector.shape_cast %20 : vector<1x8x128xf32> to vector<8x128xf32>
      %22 = vector.shape_cast %9 : vector<16x128xf32> to vector<2x8x128xf32>
      %cst_12 = arith.constant dense<0.000000e+00> : vector<8x128xf32>
      %23 = vector.multi_reduction <add>, %22, %cst_12 [0] : vector<2x8x128xf32> to vector<8x128xf32>
      %24 = arith.addf %21, %23 : vector<8x128xf32>
      %c0_13 = arith.constant 0 : index
      %c0_14 = arith.constant 0 : index
      %c0_15 = arith.constant 0 : index
      %25 = vector.load %arg4[%c0_13, %c0_14, %c0_15] : memref<1x8x128xf32, #tpu.memory_space<vmem>>, vector<1x8x128xf32>
      %26 = vector.shape_cast %25 : vector<1x8x128xf32> to vector<8x128xf32>
      %27 = vector.shape_cast %24 : vector<8x128xf32> to vector<1x8x128xf32>
      tpu.vector_store %arg4[%c0_13, %c0_14, %c0_15], %27 {strides = array<i32>} : memref<1x8x128xf32, #tpu.memory_space<vmem>>, vector<1x8x128xf32>,
    } else {
    }
    %true = arith.constant true
    %17 = arith.xori %14, %true : i1
    %18 = arith.extui %17 : i1 to i32
    %c0_i32_8 = arith.constant 0 : i32
    %19 = arith.cmpi ne, %18, %c0_i32_8 : i32
    scf.if %19 {
      %20 = tpu.iota {dimensions = array<i32: 0>} : vector<16x128xi32>
      %21 = vector.broadcast %12 : i32 to vector<16x128xi32>
      %22 = arith.addi %21, %20 : vector<16x128xi32>
      %c16_i32_9 = arith.constant 16 : i32
      %23 = vector.broadcast %c16_i32_9 : i32 to vector<16x128xi32>
      %24 = arith.cmpi slt, %22, %23 : vector<16x128xi32>
      %cst_10 = arith.constant 0.000000e+00 : f32
      %25 = vector.broadcast %cst_10 : f32 to vector<16x128xf32>
      %26 = arith.select %24, %9, %25 : vector<16x128xi1>, vector<16x128xf32>
      %c0_11 = arith.constant 0 : index
      %c0_12 = arith.constant 0 : index
      %c0_13 = arith.constant 0 : index
      %27 = vector.load %arg4[%c0_11, %c0_12, %c0_13] : memref<1x8x128xf32, #tpu.memory_space<vmem>>, vector<1x8x128xf32>
      %28 = vector.shape_cast %27 : vector<1x8x128xf32> to vector<8x128xf32>
      %29 = vector.shape_cast %26 : vector<16x128xf32> to vector<2x8x128xf32>
      %cst_14 = arith.constant dense<0.000000e+00> : vector<8x128xf32>
      %30 = vector.multi_reduction <add>, %29, %cst_14 [0] : vector<2x8x128xf32> to vector<8x128xf32>
      %31 = arith.addf %28, %30 : vector<8x128xf32>
      %c0_15 = arith.constant 0 : index
      %c0_16 = arith.constant 0 : index
      %c0_17 = arith.constant 0 : index
      %32 = vector.load %arg4[%c0_15, %c0_16, %c0_17] : memref<1x8x128xf32, #tpu.memory_space<vmem>>, vector<1x8x128xf32>
      %33 = vector.shape_cast %32 : vector<1x8x128xf32> to vector<8x128xf32>
      %34 = vector.shape_cast %31 : vector<8x128xf32> to vector<1x8x128xf32>
      tpu.vector_store %arg4[%c0_15, %c0_16, %c0_17], %34 {strides = array<i32>} : memref<1x8x128xf32, #tpu.memory_space<vmem>>, vector<1x8x128xf32>,
    } else {
    }
    return
  }
  func.func @transform_0(%arg0: i32, %arg1: i32) -> (i32, i32) {
    %c1_i32 = arith.constant 1 : i32
    %0 = arith.muli %arg0, %c1_i32 : i32
    %1 = arith.addi %0, %arg1 : i32
    %c0_i32 = arith.constant 0 : i32
    %2 = arith.minsi %1, %c0_i32 : i32
    %c0_i32_0 = arith.constant 0 : i32
    %c0_i32_1 = arith.constant 0 : i32
    return %2, %c0_i32_0 : i32, i32
  }
  func.func @transform_1(%arg0: i32, %arg1: i32) -> (i32, i32) {
    %c1_i32 = arith.constant 1 : i32
    %0 = arith.muli %arg0, %c1_i32 : i32
    %1 = arith.addi %0, %arg1 : i32
    %c0_i32 = arith.constant 0 : i32
    %2 = arith.minsi %1, %c0_i32 : i32
    %c0_i32_0 = arith.constant 0 : i32
    %c0_i32_1 = arith.constant 0 : i32
    return %2, %c0_i32_0 : i32, i32
  }
  func.func @transform_2(%arg0: i32, %arg1: i32) -> (i32, i32, i32) {
    %c0_i32 = arith.constant 0 : i32
    %c0_i32_0 = arith.constant 0 : i32
    %c0_i32_1 = arith.constant 0 : i32
    return %arg0, %c0_i32, %c0_i32_0 : i32, i32, i32
  }
}

</mosaic_0001>

<llo_original>
// kernel: tpu_custom_call.1
$region0: #{tpu_custom_call.1}
  #allocation0 [shape = 'u32[]', space=smem, size = 0x4, offset = 0x4, fixed_abs, tag = 'smem constant byte address 0x4 - core index']
  #allocation1 [shape = 'u32[144,128]{1,0:T(1,128)}', space=vmem, size = 0x12000, scoped, tag = 'internal scratch']
  %s0 = inlined_call_operand.hbm [shape: f32[16,128], index: 0, kind: input, shape index: {}]
  %s1 = inlined_call_operand.hbm [shape: f32[16,128], index: 1, kind: input, shape index: {}]
  %s2 = inlined_call_operand.hbm [shape: f32[1,8,128], index: 2, kind: output, shape index: {}]
  %s3 = sld [smem:[#allocation0]]
  $region38: #{tpu_custom_call.1} parent=0
    _
  %s5 = ssub.s32 1, %s3
  %s6 = scalar_select 0, %s5, %s3
  $region1: #{tpu_custom_call.1} parent=0
    #allocation2 [shape = 'u8[8192]{0}', space=vmem, size = 0x2000, scoped, tag = 'input window, operand 0, single buffered']
    #allocation3 [shape = 's32[1]{0}', space=sflag, size = 0x4, scoped, tag = 'scoped memory for tpu_custom_call.1']
    #allocation4 [shape = 's32[1]{0}', space=sflag, size = 0x4, scoped, tag = 'scoped memory for tpu_custom_call.1']
    #allocation5 [shape = 'u8[8192]{0}', space=vmem, size = 0x2000, scoped, tag = 'input window, operand 1, single buffered']
    #allocation6 [shape = 's32[1]{0}', space=sflag, size = 0x4, scoped, tag = 'scoped memory for tpu_custom_call.1']
    #allocation7 [shape = 'u8[4096]{0}', space=vmem, size = 0x1000, scoped, tag = 'output window, operand 0, single buffered']
    %7 = vsyncpa [#allocation3], 0
    %8 = vsyncpa [#allocation6], 0
    %9 = vsyncpa [#allocation4], 0
    // Predicated region
    $region2: #{tpu_custom_call.1} parent=1 // pred_check
      _
    $region3: #{tpu_custom_call.1} parent=1 // pred_check_branch
      %11 = sbr.rel (0) target = $region5
    $region4: #{tpu_custom_call.1} parent=1 // pred_region
      %s12 = sadd.s32 0, 0
      %p13 = scmp.lt.s32.totalorder %s12, 0
      %s14 = scalar_select %p13, %s12, 0
      %s15 = smul.u32 2, %s14
      %s17 = ssub.s32 256, 256
      %18 = vsyncadd [#allocation3], %s17
      %s19 = smul.addr %s15, 128
      %s20 = scalar_lea.hbm %s0, %s19
      %s21 = sshll.u32 [#allocation2], 4
      %s22 = int_to_ptr.vmem [resolvable:$true] %s21
      %27 = dma.hbm_to_vmem [thread:$0]  %s20, 256, %s22, [#allocation3], 128, 128, 8
    $region5: #{tpu_custom_call.1} parent=1 // pred_fallthru
      _
    // Predicated region
    $region6: #{tpu_custom_call.1} parent=1 // pred_check
      _
    $region7: #{tpu_custom_call.1} parent=1 // pred_check_branch
      %29 = sbr.rel (0) target = $region9
    $region8: #{tpu_custom_call.1} parent=1 // pred_region
      %s30 = sadd.s32 0, 0
      %p31 = scmp.lt.s32.totalorder %s30, 0
      %s32 = scalar_select %p31, %s30, 0
      %s33 = smul.u32 2, %s32
      %s35 = ssub.s32 256, 256
      %36 = vsyncadd [#allocation6], %s35
      %s37 = smul.addr %s33, 128
      %s38 = scalar_lea.hbm %s1, %s37
      %s39 = sshll.u32 [#allocation5], 4
      %s40 = int_to_ptr.vmem [resolvable:$true] %s39
      %45 = dma.hbm_to_vmem [thread:$0]  %s38, 256, %s40, [#allocation6], 128, 128, 8
    $region9: #{tpu_custom_call.1} parent=1 // pred_fallthru
      _
    // Predicated region
    $region10: #{tpu_custom_call.1} parent=1 // pred_check
      _
    $region11: #{tpu_custom_call.1} parent=1 // pred_check_branch
      %47 = sbr.rel (0) target = $region13
    $region12: #{tpu_custom_call.1} parent=1 // pred_region
      %48 = dma.done [#allocation3], 256
    $region13: #{tpu_custom_call.1} parent=1 // pred_fallthru
      _
    // Predicated region
    $region14: #{tpu_custom_call.1} parent=1 // pred_check
      _
    $region15: #{tpu_custom_call.1} parent=1 // pred_check_branch
      %50 = sbr.rel (0) target = $region17
    $region16: #{tpu_custom_call.1} parent=1 // pred_region
      %51 = dma.done [#allocation6], 256
    $region17: #{tpu_custom_call.1} parent=1 // pred_fallthru
      _
    %s52 = sadd.s32 0, 0
    %p53 = scmp.lt.s32.totalorder %s52, 0
    %s54 = scalar_select %p53, %s52, 0
    %s55 = smul.u32 2, %s54
    %s56 = sadd.s32 0, 0
    %p57 = scmp.lt.s32.totalorder %s56, 0
    %s58 = scalar_select %p57, %s56, 0
    %s59 = smul.u32 2, %s58
    %p60 = scmp.eq.s32.totalorder 0, 0
    // Predicated region
    $region18: #{tpu_custom_call.1} parent=1 // pred_check
      %p61 = pneg %p60
    $region19: #{tpu_custom_call.1} parent=1 // pred_check_branch
      %63 = sbr.rel (%p61) target = $region21
    $region20: #{tpu_custom_call.1} parent=1 // pred_region
      %64 = vst [vmem:[#allocation7] sm:$0xff] 0.0
    $region21: #{tpu_custom_call.1} parent=1 // pred_fallthru
      _
    %v65 = vld [vmem:[#allocation2] sm:$0xff]
    %v66 = vld [vmem:[#allocation2 + $0x8] sm:$0xff]
    %v67 = vld [vmem:[#allocation5] sm:$0xff]
    %v68 = vld [vmem:[#allocation5 + $0x8] sm:$0xff]
    %v69 = vmul.f32 %v65, %v67
    %v70 = vmul.f32 %v66, %v68
    %v71 = vsub.f32 1.0, %v69
    %v72 = vsub.f32 1.0, %v70
    %v73 = vmax.f32 %v71, 0.0
    %v74 = vmax.f32 %v72, 0.0
    %s75 = sadd.s32 0, 0
    %s76 = smul.u32 %s75, 16
    %s77 = sadd.s32 %s76, 16
    %p78 = scmp.le.s32.totalorder %s77, 16
    // Predicated region
    $region22: #{tpu_custom_call.1} parent=1 // pred_check
      %p79 = pneg %p78
    $region23: #{tpu_custom_call.1} parent=1 // pred_check_branch
      %81 = sbr.rel (%p79) target = $region25
    $region24: #{tpu_custom_call.1} parent=1 // pred_region
      %v82 = vld [vmem:[#allocation7] sm:$0xff]
      %v83 = vadd.f32 %v73, %v74
      %v84 = vadd.f32 %v82, %v83
      %85 = vst [vmem:[#allocation7] sm:$0xff] %v84
    $region25: #{tpu_custom_call.1} parent=1 // pred_fallthru
      _
    %p86 = scmp.gt.s32.totalorder %s77, 16
    // Predicated region
    $region26: #{tpu_custom_call.1} parent=1 // pred_check
      %p87 = pneg %p86
    $region27: #{tpu_custom_call.1} parent=1 // pred_check_branch
      %89 = sbr.rel (%p87) target = $region29
    $region28: #{tpu_custom_call.1} parent=1 // pred_region
      %v90 = vlaneseq
      %v91 = vshrl.u32 %v90, 7
      %v92 = vadd.s32 %v91, 8
      %v93 = vstv %s76
      %v94 = vadd.s32 %v93, %v91
      %v95 = vadd.s32 %v93, %v92
      %vm96 = vcmp.lt.s32.totalorder %v94, 16
      %vm97 = vcmp.lt.s32.totalorder %v95, 16
      %v98 = vsel %vm96, %v73, 0.0
      %v99 = vsel %vm97, %v74, 0.0
      %v100 = vld [vmem:[#allocation7] sm:$0xff]
      %v101 = vadd.f32 %v98, %v99
      %v102 = vadd.f32 %v100, %v101
      %103 = vst [vmem:[#allocation7] sm:$0xff] %v102
    $region29: #{tpu_custom_call.1} parent=1 // pred_fallthru
      _
    // Predicated region
    $region30: #{tpu_custom_call.1} parent=1 // pred_check
      _
    $region31: #{tpu_custom_call.1} parent=1 // pred_check_branch
      %105 = sbr.rel (0) target = $region33
    $region32: #{tpu_custom_call.1} parent=1 // pred_region
      %s107 = ssub.s32 128, 128
      %108 = vsyncadd [#allocation4], %s107
      %s110 = sshll.u32 [#allocation7], 4
      %s111 = int_to_ptr.vmem [resolvable:$true] %s110
      %113 = dma.vmem_to_hbm [thread:$0]  %s111, 128, %s2, [#allocation4]
    $region33: #{tpu_custom_call.1} parent=1 // pred_fallthru
      _
    // Predicated region
    $region34: #{tpu_custom_call.1} parent=1 // pred_check
      _
    $region35: #{tpu_custom_call.1} parent=1 // pred_check_branch
      %115 = sbr.rel (0) target = $region37
    $region36: #{tpu_custom_call.1} parent=1 // pred_region
      %116 = dma.done [#allocation4], 128
    $region37: #{tpu_custom_call.1} parent=1 // pred_fallthru
      _
    %117 = vsyncpa [#allocation3], 1
    %118 = vsyncpa [#allocation6], 1
    %119 = vsyncpa [#allocation4], 1

</llo_original>
